<compile_context>
chip_gen: v6e
topology: v6e:2x2x1
jax: 0.10.0
libtpu: 0.0.40
codegen_flags: <defaults>
</compile_context>

<pallas_src>
import functools

import jax
import jax.numpy as jnp
from jax.experimental import pallas as pl
from jax.experimental.pallas import tpu as pltpu


def _round_up(x, m):
    return (x + m - 1) // m * m


# ----------------------------------------------------------------------------- kernel


def _masked_linear_kernel(eidx_ref, x_ref, wt_ref, b_ref, m_ref, o_ref, acc_ref,
                          *, num_ensemble):
    """Grid = (batch tiles, N tiles, K tiles); K (axis 2) is the reduction axis."""
    k = pl.program_id(2)

    @pl.when(k == 0)
    def _():
        acc_ref[...] = jnp.zeros_like(acc_ref)

    # bf16 x bf16 -> f32 accumulation on the MXU.
    acc_ref[...] += jnp.dot(x_ref[...], wt_ref[...],
                            preferred_element_type=jnp.float32)

    @pl.when(k == pl.num_programs(2) - 1)
    def _():
        acc = acc_ref[...] + b_ref[...]          # f32 epilogue: bias
        row_e = eidx_ref[...]                    # (tb, 1) int32: ensemble id of each row
        mrows = m_ref[...]                       # (E, tn) f32: per-ensemble output masks
        mask = jnp.zeros_like(acc)
        for e in range(num_ensemble):            # E is small & static -> cheap VPU selects
            mask = jnp.where(row_e == e, mrows[e:e + 1, :], mask)
        o_ref[...] = (acc * mask).astype(o_ref.dtype)


def masked_linear(x_bf16, wt_bf16, bias_row, masks, row_eidx, *, tb, tn, tk):
    """o = (x @ W^T + b) * mask[row_ensemble] on padded, tiled operands."""
    B_pad, K_pad = x_bf16.shape
    N_pad = wt_bf16.shape[1]
    E = masks.shape[0]
    assert B_pad % tb == 0 and N_pad % tn == 0 and K_pad % tk == 0

    grid = (B_pad // tb, N_pad // tn, K_pad // tk)
    kernel = functools.partial(_masked_linear_kernel, num_ensemble=E)

    cost = pl.CostEstimate(
        flops=2 * B_pad * K_pad * N_pad,
        transcendentals=0,
        bytes_accessed=(B_pad * K_pad * 2          # x (bf16)
                        + K_pad * N_pad * 2        # W^T (bf16)
                        + B_pad * N_pad * 4        # output (f32)
                        + E * N_pad * 4            # ensemble masks
                        + N_pad * 4                # bias
                        + B_pad * 4),              # per-row ensemble index
    )

    return pl.pallas_call(
        kernel,
        out_shape=jax.ShapeDtypeStruct((B_pad, N_pad), jnp.float32),
        grid_spec=pltpu.PrefetchScalarGridSpec(
            num_scalar_prefetch=0,
            grid=grid,
            in_specs=[
                pl.BlockSpec((tb, 1), lambda i, j, k: (i, 0)),    # per-row ensemble id
                pl.BlockSpec((tb, tk), lambda i, j, k: (i, k)),   # x tile (bf16)
                pl.BlockSpec((tk, tn), lambda i, j, k: (k, j)),   # W^T tile (bf16)
                pl.BlockSpec((1, tn), lambda i, j, k: (0, j)),    # bias row (f32)
                pl.BlockSpec((E, tn), lambda i, j, k: (0, j)),    # (E, tn) ensemble masks
            ],
            out_specs=pl.BlockSpec((tb, tn), lambda i, j, k: (i, j)),
            scratch_shapes=[pltpu.VMEM((tb, tn), jnp.float32)],   # f32 accumulator
        ),
        compiler_params=pltpu.CompilerParams(
            dimension_semantics=("parallel", "parallel", "arbitrary"),
        ),
        cost_estimate=cost,
    )(row_eidx, x_bf16, wt_bf16, bias_row, masks)


# ----------------------------------------------------------------------------- glue (plain JAX)


def choose_tiles(B, K, N):
    tb = min(256, _round_up(B, 16))          # bf16 sublane packing -> multiple of 16
    tn = min(256, _round_up(N, 128))         # lane-dense (multiple of 128) output tiles
    if K > 512:                              # tile K only when it is large
        tk = 512
        k_pad = _round_up(K, tk)
    else:
        tk = K
        k_pad = K
    b_pad = _round_up(B, tb)
    n_pad = _round_up(N, tn)
    return tb, tn, tk, b_pad, n_pad, k_pad


def prepare_linear_params(weight, bias, *, k_pad, n_pad):
    """Hoistable per-layer prep: pad, transpose ONCE, cast weight to bf16."""
    N, K = weight.shape
    w = jnp.pad(weight.astype(jnp.float32), ((0, n_pad - N), (0, k_pad - K)))
    wt = w.T.astype(jnp.bfloat16)                                         # (K_pad, N_pad)
    b = jnp.pad(bias.astype(jnp.float32), (0, n_pad - N)).reshape(1, n_pad)
    return wt, b


def build_ensemble_masks(score_params, pruning_percentage, n_pad):
    """mask_e = (|s_e| >= quantile(|s_e|, q)) for each ensemble member, padded to (E, n_pad)."""
    scores = jnp.abs(score_params.astype(jnp.float32))                    # (E, N)
    thr = jnp.quantile(scores, pruning_percentage, axis=1, keepdims=True)  # torch default: linear interp
    masks = (scores >= thr).astype(jnp.float32)                           # (E, N)
    n = masks.shape[1]
    if n_pad > n:
        masks = jnp.pad(masks, ((0, 0), (0, n_pad - n)))
    return masks


def build_row_ensemble_index(batch, ensemble, b_pad):
    """Ensemble index per batch row; matches masks.repeat(1, m).view(-1, N) + cat(masks[:rest])."""
    m = batch // ensemble
    r = jnp.arange(b_pad, dtype=jnp.int32)
    main = r // m
    tail = (r - ensemble * m) // m
    eidx = jnp.where(r < ensemble * m, main, tail)
    eidx = jnp.clip(eidx, 0, ensemble - 1)          # padded rows: value irrelevant (sliced off)
    return eidx.reshape(b_pad, 1)


def batch_ensemble_forward_masked(x, weight, bias, score_params, pruning_percentage):
    """Full forward pass of BatchEnsembleForwardMaskedWrapper (where='output', nn.Linear)."""
    B, K = x.shape
    N = weight.shape[0]
    E = score_params.shape[0]
    assert B >= E, "batch must be >= ensemble size (required by the original module too)"

    tb, tn, tk, b_pad, n_pad, k_pad = choose_tiles(B, K, N)

    # TODO(synk): for repeated inference calls, cache the results of prepare_linear_params /
    # build_ensemble_masks / build_row_ensemble_index instead of rebuilding them each call.
    wt, b_row = prepare_linear_params(weight, bias, k_pad=k_pad, n_pad=n_pad)
    masks = build_ensemble_masks(score_params, pruning_percentage, n_pad)
    row_eidx = build_row_ensemble_index(B, E, b_pad)

    x_p = jnp.pad(x.astype(jnp.float32), ((0, b_pad - B), (0, k_pad - K)))
    x_bf = x_p.astype(jnp.bfloat16)

    out = masked_linear(x_bf, wt, b_row, masks, row_eidx, tb=tb, tn=tn, tk=tk)
    return out[:B, :N]


# ----------------------------------------------------------------------------- test


def _reference(x, weight, bias, score_params, q, *, bf16):
    """Pure-JAX reference mirroring the PyTorch module (optionally with bf16 MXU inputs)."""
    B = x.shape[0]
    E = score_params.shape[0]
    scores = jnp.abs(score_params.astype(jnp.float32))
    thr = jnp.quantile(scores, q, axis=1, keepdims=True)
    masks = (scores >= thr).astype(jnp.float32)                  # (E, N)
    m = B // E
    rest = B % E
    masks_b = jnp.repeat(masks, m, axis=0)                       # (E*m, N)
    if rest > 0:
        masks_b = jnp.concatenate([masks_b, masks_b[:rest]], axis=0)
    if bf16:
        acc = jnp.dot(x.astype(jnp.bfloat16), weight.T.astype(jnp.bfloat16),
                      preferred_element_type=jnp.float32)
    else:
        acc = x @ weight.T
    return (acc + bias[None, :]) * masks_b


if __name__ == "__main__":
    key = jax.random.PRNGKey(0)

    # Case 1: tiny shapes consistent with the module's forward (exercise padding to 128 lanes).
    B, K, N, E, q = 8, 32, 32, 2, 0.5
    k1, k2, k3, k4, key = jax.random.split(key, 5)
    x = jax.random.normal(k1, (B, K), dtype=jnp.float32)
    w = jax.random.normal(k2, (N, K), dtype=jnp.float32) * 0.1   # nn.Linear weight (out, in)
    b = jax.random.normal(k3, (N,), dtype=jnp.float32) * 0.1     # nn.Linear bias (out,)
    s = jax.random.normal(k4, (E, N), dtype=jnp.float32)         # per-ensemble mask scores

    out = jax.block_until_ready(batch_ensemble_forward_masked(x, w, b, s, q))
    assert out.shape == (B, N)
    assert jnp.allclose(out, _reference(x, w, b, s, q, bf16=True), atol=2e-3, rtol=2e-3)
    assert jnp.allclose(out, _reference(x, w, b, s, q, bf16=False), atol=5e-2, rtol=5e-2)

    # Case 2: multi-tile case (multi-step parallel grid, N padding, B % E tail rows).
    B, K, N, E, q = 512, 256, 384, 3, 0.3
    k1, k2, k3, k4, key = jax.random.split(key, 5)
    x = jax.random.normal(k1, (B, K), dtype=jnp.float32)
    w = jax.random.normal(k2, (N, K), dtype=jnp.float32) * 0.05
    b = jax.random.normal(k3, (N,), dtype=jnp.float32) * 0.1
    s = jax.random.normal(k4, (E, N), dtype=jnp.float32)

    out = jax.block_until_ready(batch_ensemble_forward_masked(x, w, b, s, q))
    assert out.shape == (B, N)
    assert jnp.allclose(out, _reference(x, w, b, s, q, bf16=True), atol=5e-3, rtol=5e-3)

    print("KERNEL_OK")
</pallas_src>

<mosaic_0001>
module attributes {stable_mosaic.version = 11 : i64} {
  func.func @_masked_linear_kernel(%arg0: i32, %arg1: i32, %arg2: i32, %arg3: memref<16x1xi32, #tpu.memory_space<vmem>>, %arg4: memref<16x32xbf16, #tpu.memory_space<vmem>>, %arg5: memref<32x128xbf16, #tpu.memory_space<vmem>>, %arg6: memref<1x128xf32, #tpu.memory_space<vmem>>, %arg7: memref<2x128xf32, #tpu.memory_space<vmem>>, %arg8: memref<16x128xf32, #tpu.memory_space<vmem>>, %arg9: memref<16x128xf32, #tpu.memory_space<vmem>>) attributes {dimension_semantics = [#tpu.dimension_semantics<parallel>, #tpu.dimension_semantics<parallel>, #tpu.dimension_semantics<arbitrary>], iteration_bounds = array<i64: 1, 1, 1>, scalar_prefetch = 0 : i64, scratch_operands = 1 : i64, tpu.core_type = #tpu.core_type<tc>, window_params = [{transform_indices = @transform_0, window_bounds = array<i64: 16, 1>}, {transform_indices = @transform_1, window_bounds = array<i64: 16, 32>}, {transform_indices = @transform_2, window_bounds = array<i64: 32, 128>}, {transform_indices = @transform_3, window_bounds = array<i64: 1, 128>}, {transform_indices = @transform_4, window_bounds = array<i64: 2, 128>}, {transform_indices = @transform_5, window_bounds = array<i64: 16, 128>}]} {
    %c0_i32 = arith.constant 0 : i32
    %0 = arith.cmpi eq, %arg2, %c0_i32 : i32
    %1 = arith.extui %0 : i1 to i32
    %c0_i32_0 = arith.constant 0 : i32
    %2 = arith.cmpi ne, %1, %c0_i32_0 : i32
    scf.if %2 {
      %cst_10 = arith.constant 0.000000e+00 : f32
      %12 = vector.broadcast %cst_10 : f32 to vector<16x128xf32>
      %c0_11 = arith.constant 0 : index
      %c0_12 = arith.constant 0 : index
      %13 = vector.load %arg9[%c0_11, %c0_12] : memref<16x128xf32, #tpu.memory_space<vmem>>, vector<16x128xf32>
      tpu.vector_store %arg9[%c0_11, %c0_12], %12 {strides = array<i32>} : memref<16x128xf32, #tpu.memory_space<vmem>>, vector<16x128xf32>,
    } else {
    }
    %c0 = arith.constant 0 : index
    %c0_1 = arith.constant 0 : index
    %3 = vector.load %arg9[%c0, %c0_1] : memref<16x128xf32, #tpu.memory_space<vmem>>, vector<16x128xf32>
    %c0_2 = arith.constant 0 : index
    %c0_3 = arith.constant 0 : index
    %4 = vector.load %arg4[%c0_2, %c0_3] : memref<16x32xbf16, #tpu.memory_space<vmem>>, vector<16x32xbf16>
    %c0_4 = arith.constant 0 : index
    %c0_5 = arith.constant 0 : index
    %5 = vector.load %arg5[%c0_4, %c0_5] : memref<32x128xbf16, #tpu.memory_space<vmem>>, vector<32x128xbf16>
    %cst = arith.constant dense<0.000000e+00> : vector<16x128xf32>
    %6 = tpu.matmul %4, %5, %cst {dimension_numbers = #tpu.dot_dimension_numbers<[1], [0], [0], [1], [0, 0, 1, 1], [], []>} : vector<16x32xbf16>, vector<32x128xbf16>, vector<16x128xf32> -> vector<16x128xf32>
    %7 = arith.addf %3, %6 : vector<16x128xf32>
    %c0_6 = arith.constant 0 : index
    %c0_7 = arith.constant 0 : index
    %8 = vector.load %arg9[%c0_6, %c0_7] : memref<16x128xf32, #tpu.memory_space<vmem>>, vector<16x128xf32>
    tpu.vector_store %arg9[%c0_6, %c0_7], %7 {strides = array<i32>} : memref<16x128xf32, #tpu.memory_space<vmem>>, vector<16x128xf32>,
    %c0_i32_8 = arith.constant 0 : i32
    %9 = arith.cmpi eq, %arg2, %c0_i32_8 : i32
    %10 = arith.extui %9 : i1 to i32
    %c0_i32_9 = arith.constant 0 : i32
    %11 = arith.cmpi ne, %10, %c0_i32_9 : i32
    scf.if %11 {
      %c0_10 = arith.constant 0 : index
      %c0_11 = arith.constant 0 : index
      %12 = vector.load %arg9[%c0_10, %c0_11] : memref<16x128xf32, #tpu.memory_space<vmem>>, vector<16x128xf32>
      %c0_12 = arith.constant 0 : index
      %c0_13 = arith.constant 0 : index
      %13 = vector.load %arg6[%c0_12, %c0_13] : memref<1x128xf32, #tpu.memory_space<vmem>>, vector<1x128xf32>
      %14 = vector.broadcast %13 : vector<1x128xf32> to vector<16x128xf32>
      %15 = arith.addf %12, %14 : vector<16x128xf32>
      %c0_14 = arith.constant 0 : index
      %c0_15 = arith.constant 0 : index
      %16 = vector.load %arg3[%c0_14, %c0_15] : memref<16x1xi32, #tpu.memory_space<vmem>>, vector<16x1xi32>
      %c0_16 = arith.constant 0 : index
      %c0_17 = arith.constant 0 : index
      %17 = vector.load %arg7[%c0_16, %c0_17] : memref<2x128xf32, #tpu.memory_space<vmem>>, vector<2x128xf32>
      %cst_18 = arith.constant 0.000000e+00 : f32
      %18 = vector.broadcast %cst_18 : f32 to vector<16x128xf32>
      %c0_i32_19 = arith.constant 0 : i32
      %19 = vector.broadcast %c0_i32_19 : i32 to vector<16x1xi32>
      %20 = arith.cmpi eq, %16, %19 : vector<16x1xi32>
      %21 = vector.extract_strided_slice %17 {offsets = [0, 0], sizes = [1, 128], strides = [1, 1]} : vector<2x128xf32> to vector<1x128xf32>
      %22 = vector.shape_cast %20 : vector<16x1xi1> to vector<16x1xi1>
      %23 = vector.broadcast %22 : vector<16x1xi1> to vector<16x128xi1>
      %24 = vector.shape_cast %21 : vector<1x128xf32> to vector<1x128xf32>
      %25 = vector.broadcast %24 : vector<1x128xf32> to vector<16x128xf32>
      %26 = arith.select %23, %25, %18 : vector<16x128xi1>, vector<16x128xf32>
      %c1_i32 = arith.constant 1 : i32
      %27 = vector.broadcast %c1_i32 : i32 to vector<16x1xi32>
      %28 = arith.cmpi eq, %16, %27 : vector<16x1xi32>
      %29 = vector.extract_strided_slice %17 {offsets = [1, 0], sizes = [1, 128], strides = [1, 1]} : vector<2x128xf32> to vector<1x128xf32>
      %30 = vector.shape_cast %28 : vector<16x1xi1> to vector<16x1xi1>
      %31 = vector.broadcast %30 : vector<16x1xi1> to vector<16x128xi1>
      %32 = vector.shape_cast %29 : vector<1x128xf32> to vector<1x128xf32>
      %33 = vector.broadcast %32 : vector<1x128xf32> to vector<16x128xf32>
      %34 = arith.select %31, %33, %26 : vector<16x128xi1>, vector<16x128xf32>
      %35 = arith.mulf %15, %34 : vector<16x128xf32>
      %c0_20 = arith.constant 0 : index
      %c0_21 = arith.constant 0 : index
      %36 = vector.load %arg8[%c0_20, %c0_21] : memref<16x128xf32, #tpu.memory_space<vmem>>, vector<16x128xf32>
      tpu.vector_store %arg8[%c0_20, %c0_21], %35 {strides = array<i32>} : memref<16x128xf32, #tpu.memory_space<vmem>>, vector<16x128xf32>,
    } else {
    }
    return
  }
  func.func @transform_0(%arg0: i32, %arg1: i32, %arg2: i32) -> (i32, i32) {
    %c0_i32 = arith.constant 0 : i32
    %c0_i32_0 = arith.constant 0 : i32
    return %arg0, %c0_i32 : i32, i32
  }
  func.func @transform_1(%arg0: i32, %arg1: i32, %arg2: i32) -> (i32, i32) {
    %c0_i32 = arith.constant 0 : i32
    return %arg0, %arg2 : i32, i32
  }
  func.func @transform_2(%arg0: i32, %arg1: i32, %arg2: i32) -> (i32, i32) {
    %c0_i32 = arith.constant 0 : i32
    return %arg2, %arg1 : i32, i32
  }
  func.func @transform_3(%arg0: i32, %arg1: i32, %arg2: i32) -> (i32, i32) {
    %c0_i32 = arith.constant 0 : i32
    %c0_i32_0 = arith.constant 0 : i32
    return %c0_i32, %arg1 : i32, i32
  }
  func.func @transform_4(%arg0: i32, %arg1: i32, %arg2: i32) -> (i32, i32) {
    %c0_i32 = arith.constant 0 : i32
    %c0_i32_0 = arith.constant 0 : i32
    return %c0_i32, %arg1 : i32, i32
  }
  func.func @transform_5(%arg0: i32, %arg1: i32, %arg2: i32) -> (i32, i32) {
    %c0_i32 = arith.constant 0 : i32
    return %arg0, %arg1 : i32, i32
  }
}

</mosaic_0001>

<llo_original>
// kernel: tpu_custom_call.1
$region0: #{tpu_custom_call.1}
  #allocation0 [shape = 'u32[]', space=smem, size = 0x4, offset = 0x4, fixed_abs, tag = 'smem constant byte address 0x4 - core index']
  #allocation1 [shape = 'u32[144,128]{1,0:T(1,128)}', space=vmem, size = 0x12000, scoped, tag = 'internal scratch']
  #allocation2 [shape = 'f32[16,128]{1,0:T(8,128)}', space=vmem, size = 0x2000, scoped, tag = 'scratch operand']
  %s0 = inlined_call_operand.vmem [shape: s32[16,1], index: 0, kind: input, shape index: {}]
  %s1 = inlined_call_operand.hbm [shape: bf16[16,32], index: 1, kind: input, shape index: {}]
  %s2 = inlined_call_operand.vmem [shape: bf16[32,128], index: 2, kind: input, shape index: {}]
  %s3 = inlined_call_operand.vmem [shape: f32[1,128], index: 3, kind: input, shape index: {}]
  %s4 = inlined_call_operand.vmem [shape: f32[2,128], index: 4, kind: input, shape index: {}]
  %s5 = inlined_call_operand.hbm [shape: f32[16,128], index: 5, kind: output, shape index: {}]
  %s6 = sld [smem:[#allocation0]]
  $region42: #{tpu_custom_call.1} parent=0
    _
  %s8 = ssub.s32 1, %s6
  %s9 = scalar_select 0, %s8, %s6
  $region1: #{tpu_custom_call.1} parent=0
    #allocation3 [shape = 'u8[4096]{0}', space=vmem, size = 0x1000, scoped, tag = 'input window, operand 1, single buffered']
    #allocation4 [shape = 's32[1]{0}', space=sflag, size = 0x4, scoped, tag = 'scoped memory for tpu_custom_call.1']
    #allocation5 [shape = 's32[1]{0}', space=sflag, size = 0x4, scoped, tag = 'scoped memory for tpu_custom_call.1']
    #allocation6 [shape = 'u8[8192]{0}', space=vmem, size = 0x2000, scoped, tag = 'output window, operand 0, single buffered']
    %10 = vsyncpa [#allocation4], 0
    %11 = vsyncpa [#allocation5], 0
    // Predicated region
    $region2: #{tpu_custom_call.1} parent=1 // pred_check
      _
    $region3: #{tpu_custom_call.1} parent=1 // pred_check_branch
      %13 = sbr.rel (0) target = $region5
    $region4: #{tpu_custom_call.1} parent=1 // pred_region
      _
    $region5: #{tpu_custom_call.1} parent=1 // pred_fallthru
      _
    // Predicated region
    $region6: #{tpu_custom_call.1} parent=1 // pred_check
      _
    $region7: #{tpu_custom_call.1} parent=1 // pred_check_branch
      %15 = sbr.rel (0) target = $region9
    $region8: #{tpu_custom_call.1} parent=1 // pred_region
      %s17 = ssub.s32 128, 128
      %18 = vsyncadd [#allocation4], %s17
      %s19 = sshll.u32 [#allocation3], 4
      %s20 = int_to_ptr.vmem [resolvable:$true] %s19
      %25 = dma.hbm_to_vmem [thread:$0]  %s1, 128, %s20, [#allocation4], 64, 64, 4
    $region9: #{tpu_custom_call.1} parent=1 // pred_fallthru
      _
    // Predicated region
    $region10: #{tpu_custom_call.1} parent=1 // pred_check
      _
    $region11: #{tpu_custom_call.1} parent=1 // pred_check_branch
      %27 = sbr.rel (0) target = $region13
    $region12: #{tpu_custom_call.1} parent=1 // pred_region
      _
    $region13: #{tpu_custom_call.1} parent=1 // pred_fallthru
      _
    // Predicated region
    $region14: #{tpu_custom_call.1} parent=1 // pred_check
      _
    $region15: #{tpu_custom_call.1} parent=1 // pred_check_branch
      %29 = sbr.rel (0) target = $region17
    $region16: #{tpu_custom_call.1} parent=1 // pred_region
      _
    $region17: #{tpu_custom_call.1} parent=1 // pred_fallthru
      _
    // Predicated region
    $region18: #{tpu_custom_call.1} parent=1 // pred_check
      _
    $region19: #{tpu_custom_call.1} parent=1 // pred_check_branch
      %31 = sbr.rel (0) target = $region21
    $region20: #{tpu_custom_call.1} parent=1 // pred_region
      _
    $region21: #{tpu_custom_call.1} parent=1 // pred_fallthru
      _
    // Predicated region
    $region22: #{tpu_custom_call.1} parent=1 // pred_check
      _
    $region23: #{tpu_custom_call.1} parent=1 // pred_check_branch
      %33 = sbr.rel (0) target = $region25
    $region24: #{tpu_custom_call.1} parent=1 // pred_region
      %34 = dma.done [#allocation4], 128
    $region25: #{tpu_custom_call.1} parent=1 // pred_fallthru
      _
    %p36 = scmp.eq.s32.totalorder 0, 0
    // Predicated region
    $region26: #{tpu_custom_call.1} parent=1 // pred_check
      %p37 = pneg %p36
    $region27: #{tpu_custom_call.1} parent=1 // pred_check_branch
      %39 = sbr.rel (%p37) target = $region29
    $region28: #{tpu_custom_call.1} parent=1 // pred_region
      %40 = vst [vmem:[#allocation2] sm:$0xff] 0.0
      %41 = vst [vmem:[#allocation2 + $0x8] sm:$0xff] 0.0
    $region29: #{tpu_custom_call.1} parent=1 // pred_fallthru
      _
    %v42 = vld [vmem:[#allocation2] sm:$0xff]
    %v43 = vld [vmem:[#allocation2 + $0x8] sm:$0xff]
    %v44 = vld [vmem:[#allocation3] sm:$0xf]
    %v45 = vld [vmem:[#allocation3 + $0x4] sm:$0xf]
    %v46 = vld [vmem:[%s2] sm:$0xf]
    %v47 = vld [vmem:[%s2 + $0x4] sm:$0xf]
    %v48 = vld [vmem:[%s2 + $0x8] sm:$0xf]
    %v49 = vld [vmem:[%s2 + $0xc] sm:$0xf]
    %v52 = vunpack.c.l.b16 %v44
    %v53 = vunpack.c.l.b16 %v45
    %v54 = vpack.c.b16 %v53, %v52
    %v59 = vunpack.c.l.b16 %v46
    %v60 = vunpack.c.l.b16 %v47
    %v61 = vunpack.c.l.b16 %v48
    %v62 = vunpack.c.l.b16 %v49
    %v63 = vpack.c.b16 %v60, %v59
    %v64 = vpack.c.b16 %v62, %v61
    %vm67 = vcmask 261120
    %v69 = vsel %vm67, %v54, 0
    %71 = vmatprep.subr.bf16.mxu0 0
    %72 = vmatpush1.bf16.msra.mxu0 0
    %73 = vmatprep.subr.bf16.mxu0 0
    %74 = vmatpush1.bf16.msra.mxu0 0
    %75 = vmatprep.subr.bf16.mxu0 0
    %76 = vmatpush1.bf16.msra.mxu0 0
    %77 = vmatprep.subr.bf16.mxu0 0
    %78 = vmatpush1.bf16.msra.mxu0 0
    %79 = vmatprep.subr.bf16.mxu0 0
    %80 = vmatpush1.bf16.msra.mxu0 0
    %81 = vmatprep.subr.bf16.mxu0 0
    %82 = vmatpush1.bf16.msra.mxu0 0
    %83 = vmatprep.subr.bf16.mxu0 0
    %84 = vmatpush1.bf16.msra.mxu0 %v64
    %85 = vmatprep.subr.bf16.mxu0 0
    %86 = vmatpush1.bf16.msra.mxu0 %v63
    %87 = vmatprep.subr.bf16.mxu0 0
    %88 = vmatpush2.bf16.msra.mxu0 0
    %89 = vmatprep.subr.bf16.mxu0 0
    %90 = vmatpush2.bf16.msra.mxu0 0
    %91 = vmatprep.subr.bf16.mxu0 0
    %92 = vmatpush2.bf16.msra.mxu0 0
    %93 = vmatprep.subr.bf16.mxu0 0
    %94 = vmatpush2.bf16.msra.mxu0 0
    %95 = vmatprep.subr.bf16.mxu0 0
    %96 = vmatpush2.bf16.msra.mxu0 0
    %97 = vmatprep.subr.bf16.mxu0 0
    %98 = vmatpush2.bf16.msra.mxu0 0
    %99 = vmatprep.subr.bf16.mxu0 0
    %100 = vmatpush2.bf16.msra.mxu0 0
    %101 = vmatprep.subr.bf16.mxu0 0
    %102 = vmatpush2.bf16.msra.mxu0 0
    %103 = vmatprep.mubr.bf16.mxu0 0
    %104 = vmatmul.mubr.bf16.gmra.mxu0 %v69
    %v105 = vpop.f32.mrf.mxu0
    %v106 = vadd.f32 0.0, %v105
    %v107 = vpop.f32.mrf.mxu0
    %v108 = vpop.f32.mrf.mxu0
    %v109 = vadd.f32 0.0, %v108
    %v110 = vpop.f32.mrf.mxu0
    %111 = vdwg.mxu0
    %v112 = vadd.f32 %v42, %v106
    %v113 = vadd.f32 %v43, %v109
    %114 = vst [vmem:[#allocation2] sm:$0xff] %v112
    %115 = vst [vmem:[#allocation2 + $0x8] sm:$0xff] %v113
    // Predicated region
    $region30: #{tpu_custom_call.1} parent=1 // pred_check
      %p116 = pneg %p36
    $region31: #{tpu_custom_call.1} parent=1 // pred_check_branch
      %118 = sbr.rel (%p116) target = $region33
    $region32: #{tpu_custom_call.1} parent=1 // pred_region
      %v119 = vld [vmem:[#allocation2] sm:$0xff]
      %v120 = vld [vmem:[#allocation2 + $0x8] sm:$0xff]
      %v121 = vld [vmem:[%s3] sm:$0x1]
      %v123 = vlaneseq
      %v124 = vshrl.u32 %v123, 7
      %v125 = vsub.s32 0, %v124
      %v126 = vrot.slane %v121, %v125
      %v128 = vadd.f32 %v119, %v126
      %v129 = vadd.f32 %v120, %v126
      %v130 = vld [vmem:[%s0] sm:$0xff]
      %v131 = vld [vmem:[%s0 + $0x8] sm:$0xff]
      %v132 = vld [vmem:[%s4] sm:$0x3]
      %vm133 = vcmp.eq.s32.totalorder %v130, 0
      %vm134 = vcmp.eq.s32.totalorder %v131, 0
      %v135 = vsel %vm133, 1, 0
      %v136 = vsel %vm134, 1, 0
      %137 = vset.pattern.permute.xlu0 0
      %138 = vperm.xlu0 %137, %v135
      %v139 = vpop.permute.xlu0 %138
      %140 = vset.pattern.permute.xlu0 0
      %141 = vperm.xlu0 %140, %v136
      %v142 = vpop.permute.xlu0 %141
      %vm143 = vcmp.eq.s32.totalorder %v139, 1
      %vm144 = vcmp.eq.s32.totalorder %v142, 1
      %v145 = vlaneseq
      %v146 = vshrl.u32 %v145, 7
      %v147 = vsub.s32 0, %v146
      %v148 = vrot.slane %v132, %v147
      %v149 = vsel %vm143, %v148, 0.0
      %v150 = vsel %vm144, %v148, 0.0
      %vm151 = vcmp.eq.s32.totalorder %v130, 1
      %vm152 = vcmp.eq.s32.totalorder %v131, 1
      %v153 = vsel %vm151, 1, 0
      %v154 = vsel %vm152, 1, 0
      %155 = vset.pattern.permute.xlu0 0
      %156 = vperm.xlu0 %155, %v153
      %v157 = vpop.permute.xlu0 %156
      %158 = vset.pattern.permute.xlu0 0
      %159 = vperm.xlu0 %158, %v154
      %v160 = vpop.permute.xlu0 %159
      %vm161 = vcmp.eq.s32.totalorder %v157, 1
      %vm162 = vcmp.eq.s32.totalorder %v160, 1
      %v163 = vlaneseq
      %v164 = vshrl.u32 %v163, 7
      %v165 = vsub.s32 1, %v164
      %v166 = vrot.slane %v132, %v165
      %v167 = vsel %vm161, %v166, %v149
      %v168 = vsel %vm162, %v166, %v150
      %v169 = vmul.f32 %v128, %v167
      %v170 = vmul.f32 %v129, %v168
      %171 = vst [vmem:[#allocation6] sm:$0xff] %v169
      %172 = vst [vmem:[#allocation6 + $0x8] sm:$0xff] %v170
    $region33: #{tpu_custom_call.1} parent=1 // pred_fallthru
      _
    // Predicated region
    $region34: #{tpu_custom_call.1} parent=1 // pred_check
      _
    $region35: #{tpu_custom_call.1} parent=1 // pred_check_branch
      %174 = sbr.rel (0) target = $region37
    $region36: #{tpu_custom_call.1} parent=1 // pred_region
      %s176 = ssub.s32 256, 256
      %177 = vsyncadd [#allocation5], %s176
      %s178 = sshll.u32 [#allocation6], 4
      %s179 = int_to_ptr.vmem [resolvable:$true] %s178
      %184 = dma.vmem_to_hbm [thread:$0]  %s179, 256, %s5, [#allocation5], 128, 128, 8
    $region37: #{tpu_custom_call.1} parent=1 // pred_fallthru
      _
    // Predicated region
    $region38: #{tpu_custom_call.1} parent=1 // pred_check
      _
    $region39: #{tpu_custom_call.1} parent=1 // pred_check_branch
      %186 = sbr.rel (0) target = $region41
    $region40: #{tpu_custom_call.1} parent=1 // pred_region
      %187 = dma.done [#allocation5], 256
    $region41: #{tpu_custom_call.1} parent=1 // pred_fallthru
      _
    %188 = vsyncpa [#allocation4], 1
    %189 = vsyncpa [#allocation5], 1

</llo_original>
